<compile_context>
chip_gen: v5e
topology: v5e:2x2
jax: 0.10.0
libtpu: 0.0.40
codegen_flags: <defaults>
</compile_context>

<pallas_src>
import jax
import jax.numpy as jnp
from jax.experimental import pallas as pl
from jax.experimental.pallas import tpu as pltpu

_LANES = 128            # vreg lane width (last dim)
_SUBLANES = 8           # f32 sublane tile (second-to-last dim)
_MAX_BLOCK_ROWS = 4096  # (4096,128) f32 = 2 MiB/block; ~8 MiB double-buffered
                        # in+out -> safe under v5e's 16 MiB scoped-VMEM default,
                        # and large enough to sit near HBM roofline on v6e/v7x.
_BYPASS_BYTES = 1 << 20  # below ~1 MiB, plain XLA fusion beats Pallas dispatch


def _affine_kernel(wb_ref, x_ref, o_ref):
    # wb_ref: (2,) f32 in SMEM -> [weight, bias] scalars (scalar path).
    # x_ref / o_ref: (block_rows, 128) f32 VMEM tiles (lane-dense).
    w = wb_ref[0]
    b = wb_ref[1]
    # Pure VPU stream: vld -> vmul/vadd -> vst.  No MXU for a Linear(1,1).
    o_ref[...] = x_ref[...] * w + b


def _round_up(a, m):
    return -(-a // m) * m


def regression_model_forward(x, w, b, *, force_pallas=False):
    """Pallas equivalent of RegressionModel.forward (nn.Linear(1, 1)).

    x: (N, 1) float32
    w: (1, 1) float32  (out_features, in_features) -- PyTorch convention
    b: (1,)   float32
    returns: (N, 1) float32
    """
    n, in_f = x.shape
    out_f, w_in = w.shape
    assert in_f == 1 and out_f == 1 and w_in == 1

    w_s = w.reshape(())
    b_s = b.reshape(())

    # Small-N / non-f32 bypass: Pallas dispatch + pipeline prime dominates for
    # tiny inputs; the kernel path also assumes f32 (8,128) tiling.
    if (not force_pallas) and (
        x.dtype != jnp.float32 or n * x.dtype.itemsize < _BYPASS_BYTES
    ):
        return x * w_s + b_s

    x_f32 = x.astype(jnp.float32)

    # --- lane-dense repack: (N, 1) -> (total_rows, 128), minimal padding ---
    granule = _SUBLANES * _LANES  # one (8,128) tile = 1024 elements
    if n % granule == 0:
        # Free view: no pad / no slice copies around the mem-bound kernel.
        padded_n = n
        x2d = x_f32.reshape(n // _LANES, _LANES)
    else:
        padded_n = _round_up(n, granule)
        x2d = jnp.pad(x_f32.reshape(-1), (0, padded_n - n)).reshape(
            padded_n // _LANES, _LANES
        )
    total_rows = padded_n // _LANES

    # Block rows: as large as VMEM comfortably allows (kernel is purely
    # HBM-bandwidth bound), but keep >=2 grid steps so the "parallel" axis can
    # shard across both TensorCores on v7x.
    block_rows = min(_MAX_BLOCK_ROWS, _round_up(-(-total_rows // 2), _SUBLANES))
    grid = (pl.cdiv(total_rows, block_rows),)

    # weight + bias as SMEM scalars (always f32 on the 32-bit scalar path).
    wb = jnp.stack([w_s, b_s]).astype(jnp.float32)

    y2d = pl.pallas_call(
        _affine_kernel,
        out_shape=jax.ShapeDtypeStruct((total_rows, _LANES), jnp.float32),
        grid=grid,
        in_specs=[
            pl.BlockSpec(memory_space=pltpu.MemorySpace.SMEM),     # wb scalars
            pl.BlockSpec((block_rows, _LANES), lambda i: (i, 0)),  # x tile
        ],
        out_specs=pl.BlockSpec((block_rows, _LANES), lambda i: (i, 0)),
        compiler_params=pltpu.CompilerParams(
            # Both TCs on v7x; harmless on v5e/v6e.  Default double-buffering
            # is already enough at MiB-scale blocks (no pl.Buffered needed).
            dimension_semantics=("parallel",),
        ),
    )(wb, x2d)

    y_flat = y2d.reshape(-1)
    if padded_n != n:
        y_flat = y_flat[:n]  # drop padded tail (only on the ragged path)
    return y_flat.reshape(n, 1).astype(x.dtype)


if __name__ == "__main__":
    key = jax.random.PRNGKey(0)
    kx, kw, kb = jax.random.split(key, 3)

    # Deterministic parameters (shapes from nn.Linear(1, 1)).
    w = jax.random.normal(kw, (1, 1), dtype=jnp.float32) * 0.5
    b = jax.random.normal(kb, (1,), dtype=jnp.float32) * 0.1

    # Case 1: tiny N (matches the demo) -> small-N bypass path.
    N0 = 8
    x0 = jax.random.normal(kx, (N0, 1), dtype=jnp.float32)
    y0 = regression_model_forward(x0, w, b)
    jax.block_until_ready(y0)
    assert y0.shape == (N0, 1)
    assert jnp.allclose(y0, x0 @ w.T + b, atol=1e-5), "bypass mismatch"

    # Case 2: aligned N (multiple of 8*128) -> Pallas kernel, zero-copy repack.
    N1 = 2048
    x1 = jax.random.normal(kx, (N1, 1), dtype=jnp.float32)
    y1 = regression_model_forward(x1, w, b, force_pallas=True)
    jax.block_until_ready(y1)
    assert y1.shape == (N1, 1)
    assert jnp.allclose(y1, x1 @ w.T + b, atol=1e-5), "kernel (aligned) mismatch"

    # Case 3: ragged N -> Pallas kernel with one-tile-granule padding.
    N2 = 1000
    x2 = jax.random.normal(kx, (N2, 1), dtype=jnp.float32)
    y2 = regression_model_forward(x2, w, b, force_pallas=True)
    jax.block_until_ready(y2)
    assert y2.shape == (N2, 1)
    assert jnp.allclose(y2, x2 @ w.T + b, atol=1e-5), "kernel (ragged) mismatch"

    print("KERNEL_OK")
</pallas_src>

<mosaic_0001>
module attributes {stable_mosaic.version = 11 : i64} {
  func.func @_affine_kernel(%arg0: i32, %arg1: memref<2xf32, #tpu.memory_space<smem>>, %arg2: memref<8x128xf32, #tpu.memory_space<vmem>>, %arg3: memref<8x128xf32, #tpu.memory_space<vmem>>) attributes {dimension_semantics = [#tpu.dimension_semantics<parallel>], iteration_bounds = array<i64: 2>, scalar_prefetch = 0 : i64, scratch_operands = 0 : i64, tpu.core_type = #tpu.core_type<tc>, window_params = [{transform_indices = @transform_0, window_bounds = array<i64: 2>}, {transform_indices = @transform_1, window_bounds = array<i64: 8, 128>}, {transform_indices = @transform_2, window_bounds = array<i64: 8, 128>}]} {
    %c0 = arith.constant 0 : index
    %0 = memref.load %arg1[%c0] : memref<2xf32, #tpu.memory_space<smem>>
    %c1 = arith.constant 1 : index
    %1 = memref.load %arg1[%c1] : memref<2xf32, #tpu.memory_space<smem>>
    %c0_0 = arith.constant 0 : index
    %c0_1 = arith.constant 0 : index
    %2 = vector.load %arg2[%c0_0, %c0_1] : memref<8x128xf32, #tpu.memory_space<vmem>>, vector<8x128xf32>
    %3 = vector.broadcast %0 : f32 to vector<8x128xf32>
    %4 = arith.mulf %2, %3 : vector<8x128xf32>
    %5 = vector.broadcast %1 : f32 to vector<8x128xf32>
    %6 = arith.addf %4, %5 : vector<8x128xf32>
    %c0_2 = arith.constant 0 : index
    %c0_3 = arith.constant 0 : index
    %7 = vector.load %arg3[%c0_2, %c0_3] : memref<8x128xf32, #tpu.memory_space<vmem>>, vector<8x128xf32>
    tpu.vector_store %arg3[%c0_2, %c0_3], %6 {strides = array<i32>} : memref<8x128xf32, #tpu.memory_space<vmem>>, vector<8x128xf32>,
    return
  }
  func.func @transform_0(%arg0: i32) -> i32 {
    %c0_i32 = arith.constant 0 : i32
    %c0_i32_0 = arith.constant 0 : i32
    return %c0_i32 : i32
  }
  func.func @transform_1(%arg0: i32) -> (i32, i32) {
    %c0_i32 = arith.constant 0 : i32
    %c0_i32_0 = arith.constant 0 : i32
    return %arg0, %c0_i32 : i32, i32
  }
  func.func @transform_2(%arg0: i32) -> (i32, i32) {
    %c0_i32 = arith.constant 0 : i32
    %c0_i32_0 = arith.constant 0 : i32
    return %arg0, %c0_i32 : i32, i32
  }
}

</mosaic_0001>

<llo_original>
// kernel: tpu_custom_call.1
$region0: #{tpu_custom_call.1}
  #allocation0 [shape = 'u32[]', space=smem, size = 0x4, offset = 0x4, fixed_abs, tag = 'smem constant byte address 0x4 - core index']
  #allocation1 [shape = 'u32[72,128]{1,0:T(1,128)}', space=vmem, size = 0x9000, scoped, tag = 'internal scratch']
  %s0 = inlined_call_operand.hbm [shape: f32[2], index: 0, kind: input, shape index: {}]
  %s1 = inlined_call_operand.hbm [shape: f32[16,128], index: 1, kind: input, shape index: {}]
  %s2 = inlined_call_operand.hbm [shape: f32[16,128], index: 2, kind: output, shape index: {}]
  %s3 = sld [smem:[#allocation0]]
  $region49: #{tpu_custom_call.1} parent=0
    _
  %s5 = ssub.s32 1, %s3
  %s6 = scalar_select 0, %s5, %s3
  $region1: #{tpu_custom_call.1} parent=0
    #allocation2 [shape = 'u8[512]{0}', space=smem, size = 0x200, scoped, tag = 'input window, operand 0, single buffered']
    #allocation3 [shape = 's32[2]{0}', space=sflag, size = 0x8, scoped, tag = 'scoped memory for tpu_custom_call.1']
    #allocation4 [shape = 's32[2]{0}', space=sflag, size = 0x8, scoped, tag = 'scoped memory for tpu_custom_call.1']
    #allocation5 [shape = 's32[2]{0}', space=sflag, size = 0x8, scoped, tag = 'scoped memory for tpu_custom_call.1']
    #allocation6 [shape = 'u8[8192]{0}', space=vmem, size = 0x2000, scoped, tag = 'input window, operand 1']
    #allocation7 [shape = 'u8[8192]{0}', space=vmem, size = 0x2000, scoped, tag = 'output window, operand 0']
    %7 = vsyncpa [#allocation5], 0
    %8 = vsyncpa [#allocation3], 0
    %s9 = scalar_lea.sflag [#allocation3], 1
    %10 = vsyncpa %s9, 0
    %11 = vsyncpa [#allocation4], 0
    %s12 = scalar_lea.sflag [#allocation4], 1
    %13 = vsyncpa %s12, 0
    loop: start=0, step=1, limit=4
    $region2: #{tpu_custom_call.1} parent=1 // loop_pre_header
      _
    $region3: #{tpu_custom_call.1} parent=1 // loop_header
      %s15 = sphi 0, %s19
      %p16 = scmp.ge.s32.totalorder %s15, 4
      %s23 = sphi 0, %s23
      %s25 = sphi 0, %s23
      %s26 = sphi 0, %s25
      %s40 = sphi 0, %s26
      %s46 = sphi 0, %s48
      %s49 = sphi 0, %s46
      %s50 = sphi 0, %s49
      %s66 = sphi 0, %s50
      %s72 = sphi 0, %s74
      %s75 = sphi 0, %s72
      %s76 = sphi 0, %s75
      %s92 = sphi 0, %s76
    $region4: #{tpu_custom_call.1} parent=1 // loop_header_branch
      %18 = sbr.rel (%p16) target = $region8
    $region5: #{tpu_custom_call.1} parent=1 // loop_body
      %s20 = ssub.s32 %s15, 1
      %s21 = ssub.s32 %s15, 2
      %s22 = sadd.s32 %s15, 1
      %s24 = sadd.s32 %s23, 1
      %p27 = scmp.eq.s32.totalorder %s15, 1
      %p28 = scmp.ne.s32.totalorder %s23, %s25
      %p29 = scmp.eq.s32.totalorder %s15, 0
      %p30 = por %p28, %p29
      %p31 = scmp.ne.s32.totalorder %s23, %s25
      %p32 = scmp.eq.s32.totalorder %s20, 1
      %p33 = por %p31, %p32
      %p34 = scmp.ne.s32.totalorder %s25, %s26
      %p35 = scmp.eq.s32.totalorder %s20, 0
      %p36 = por %p34, %p35
      %p37 = scmp.ne.s32.totalorder %s25, %s26
      %p38 = scmp.eq.s32.totalorder %s21, 1
      %p39 = por %p37, %p38
      %p41 = scmp.ne.s32.totalorder %s26, %s40
      %p42 = scmp.eq.s32.totalorder %s21, 0
      %p43 = por %p41, %p42
      %s44 = ssub.s32 %s15, %s22
      %p45 = scmp.eq.s32.totalorder %s44, 0
      %s47 = sadd.s32 %s46, 1
      %s48 = scalar_select %p45, %s46, %s47
      %p51 = pneg %p45
      %p52 = scmp.eq.s32.totalorder %s15, 1
      %p53 = por %p51, %p52
      %p54 = scmp.ne.s32.totalorder %s46, %s49
      %p55 = scmp.eq.s32.totalorder %s15, 0
      %p56 = por %p54, %p55
      %p57 = scmp.ne.s32.totalorder %s46, %s49
      %p58 = scmp.eq.s32.totalorder %s20, 1
      %p59 = por %p57, %p58
      %p60 = scmp.ne.s32.totalorder %s49, %s50
      %p61 = scmp.eq.s32.totalorder %s20, 0
      %p62 = por %p60, %p61
      %p63 = scmp.ne.s32.totalorder %s49, %s50
      %p64 = scmp.eq.s32.totalorder %s21, 1
      %p65 = por %p63, %p64
      %p67 = scmp.ne.s32.totalorder %s50, %s66
      %p68 = scmp.eq.s32.totalorder %s21, 0
      %p69 = por %p67, %p68
      %s70 = ssub.s32 %s15, %s22
      %p71 = scmp.eq.s32.totalorder %s70, 0
      %s73 = sadd.s32 %s72, 1
      %s74 = scalar_select %p71, %s72, %s73
      %p77 = pneg %p71
      %p78 = scmp.eq.s32.totalorder %s15, 1
      %p79 = por %p77, %p78
      %p80 = scmp.ne.s32.totalorder %s72, %s75
      %p81 = scmp.eq.s32.totalorder %s15, 0
      %p82 = por %p80, %p81
      %p83 = scmp.ne.s32.totalorder %s72, %s75
      %p84 = scmp.eq.s32.totalorder %s20, 1
      %p85 = por %p83, %p84
      %p86 = scmp.ne.s32.totalorder %s75, %s76
      %p87 = scmp.eq.s32.totalorder %s20, 0
      %p88 = por %p86, %p87
      %p89 = scmp.ne.s32.totalorder %s75, %s76
      %p90 = scmp.eq.s32.totalorder %s21, 1
      %p91 = por %p89, %p90
      %p93 = scmp.ne.s32.totalorder %s76, %s92
      %p94 = scmp.eq.s32.totalorder %s21, 0
      %p95 = por %p93, %p94
      %p96 = scmp.le.s32.totalorder 1, %s15
      %p97 = scmp.lt.s32.totalorder %s15, 3
      %p98 = pnand %p96, %p97
      %p99 = pneg %p98
      // Predicated region
      $region9: #{tpu_custom_call.1} parent=5 // pred_check
        _
      $region10: #{tpu_custom_call.1} parent=5 // pred_check_branch
        %101 = sbr.rel (%p98) target = $region12
      $region11: #{tpu_custom_call.1} parent=5 // pred_region
        %s102 = ssub.s32 %s15, 1
        // Predicated region
        $region13: #{tpu_custom_call.1} parent=11 // pred_check
          %p103 = pneg %p36
        $region14: #{tpu_custom_call.1} parent=11 // pred_check_branch
          %105 = sbr.rel (%p103) target = $region16
        $region15: #{tpu_custom_call.1} parent=11 // pred_region
          %107 = vsyncadd [#allocation5], 0
          %s109 = sshll.u32 %s0, 4
          %s110 = int_to_ptr.hbm [resolvable:$true] %s109
          %112 = dma.hbm_to_smem %s110, 16, [#allocation2], [#allocation5]
        $region16: #{tpu_custom_call.1} parent=11 // pred_fallthru
          _
      $region12: #{tpu_custom_call.1} parent=5 // pred_fallthru
        _
      %p113 = scmp.lt.s32.totalorder %s15, 2
      // Predicated region
      $region17: #{tpu_custom_call.1} parent=5 // pred_check
        %p114 = pneg %p113
      $region18: #{tpu_custom_call.1} parent=5 // pred_check_branch
        %116 = sbr.rel (%p114) target = $region20
      $region19: #{tpu_custom_call.1} parent=5 // pred_region
        // Predicated region
        $region21: #{tpu_custom_call.1} parent=19 // pred_check
          %p117 = pneg %p56
        $region22: #{tpu_custom_call.1} parent=19 // pred_check_branch
          %119 = sbr.rel (%p117) target = $region24
        $region23: #{tpu_custom_call.1} parent=19 // pred_region
          %s120 = sand.u32 %s46, 1
          %s121 = scalar_lea.sflag [#allocation3], %s120
          %s122 = sand.u32 %s46, 1
          %s123 = smul.addr %s122, 8
          %s124 = scalar_lea.vmem [#allocation6], %s123
          %126 = vsyncadd %s121, 0
          %s127 = smul.addr %s15, 8
          %s128 = scalar_lea.hbm %s1, %s127
          %s130 = sshll.u32 %s128, 4
          %s131 = int_to_ptr.hbm [resolvable:$true] %s130
          %s132 = sshll.u32 %s124, 4
          %s133 = int_to_ptr.vmem [resolvable:$true] %s132
          %135 = dma.hbm_to_vmem [thread:$0]  %s131, 128, %s133, %s121
        $region24: #{tpu_custom_call.1} parent=19 // pred_fallthru
          _
      $region20: #{tpu_custom_call.1} parent=5 // pred_fallthru
        _
      %p136 = scmp.le.s32.totalorder 1, %s15
      %p137 = scmp.lt.s32.totalorder %s15, 3
      %p138 = pnand %p136, %p137
      %p139 = pneg %p138
      // Predicated region
      $region25: #{tpu_custom_call.1} parent=5 // pred_check
        _
      $region26: #{tpu_custom_call.1} parent=5 // pred_check_branch
        %141 = sbr.rel (%p138) target = $region28
      $region27: #{tpu_custom_call.1} parent=5 // pred_region
        %s142 = ssub.s32 %s15, 1
        // Predicated region
        $region29: #{tpu_custom_call.1} parent=27 // pred_check
          %p143 = pneg %p36
        $region30: #{tpu_custom_call.1} parent=27 // pred_check_branch
          %145 = sbr.rel (%p143) target = $region32
        $region31: #{tpu_custom_call.1} parent=27 // pred_region
          %147 = dma.done [#allocation5], 16
        $region32: #{tpu_custom_call.1} parent=27 // pred_fallthru
          _
        %s148 = sand.u32 %s49, 1
        %s149 = scalar_lea.sflag [#allocation3], %s148
        %s150 = sand.u32 %s49, 1
        %s151 = smul.addr %s150, 8
        %s152 = scalar_lea.vmem [#allocation6], %s151
        // Predicated region
        $region33: #{tpu_custom_call.1} parent=27 // pred_check
          %p153 = pneg %p62
        $region34: #{tpu_custom_call.1} parent=27 // pred_check_branch
          %155 = sbr.rel (%p153) target = $region36
        $region35: #{tpu_custom_call.1} parent=27 // pred_region
          %157 = dma.done %s149, 128
        $region36: #{tpu_custom_call.1} parent=27 // pred_fallthru
          _
        %158 = sfence
        %p159 = pneg %p36
        %p160 = pneg %p33
        %s161 = sand.u32 %s49, 1
        %s162 = scalar_lea.sflag [#allocation3], %s161
        %s163 = sand.u32 %s49, 1
        %s164 = smul.addr %s163, 8
        %s165 = scalar_lea.vmem [#allocation6], %s164
        %p166 = pneg %p62
        %p167 = pneg %p59
        %p168 = pneg %p88
        %p169 = pneg %p85
        %s170 = sand.u32 %s75, 1
        %s171 = scalar_lea.sflag [#allocation4], %s170
        %s172 = sand.u32 %s75, 1
        %s173 = smul.addr %s172, 8
        %s174 = scalar_lea.vmem [#allocation7], %s173
        %s175 = sld [smem:[#allocation2]]
        %s176 = sld [smem:[#allocation2 + $0x1]]
        %v177 = vld [vmem:[%s152] sm:$0xff]
        %v178 = vstv %s175
        %v179 = vmul.f32 %v177, %v178
        %v180 = vstv %s176
        %v181 = vadd.f32 %v179, %v180
        %182 = vst [vmem:[%s174] sm:$0xff] %v181
        %s183 = sand.u32 %s75, 1
        %s184 = scalar_lea.sflag [#allocation4], %s183
        %s185 = sand.u32 %s75, 1
        %s186 = smul.addr %s185, 8
        %s187 = scalar_lea.vmem [#allocation7], %s186
        // Predicated region
        $region37: #{tpu_custom_call.1} parent=27 // pred_check
          %p188 = pneg %p85
        $region38: #{tpu_custom_call.1} parent=27 // pred_check_branch
          %190 = sbr.rel (%p188) target = $region40
        $region39: #{tpu_custom_call.1} parent=27 // pred_region
          %192 = vsyncadd %s184, 0
          %s193 = smul.addr %s20, 8
          %s194 = scalar_lea.hbm %s2, %s193
          %s196 = sshll.u32 %s187, 4
          %s197 = int_to_ptr.vmem [resolvable:$true] %s196
          %s198 = sshll.u32 %s194, 4
          %s199 = int_to_ptr.hbm [resolvable:$true] %s198
          %201 = dma.vmem_to_hbm [thread:$0]  %s197, 128, %s199, %s184
        $region40: #{tpu_custom_call.1} parent=27 // pred_fallthru
          _
      $region28: #{tpu_custom_call.1} parent=5 // pred_fallthru
        _
      %p202 = scmp.le.s32.totalorder 2, %s15
      // Predicated region
      $region41: #{tpu_custom_call.1} parent=5 // pred_check
        %p203 = pneg %p202
      $region42: #{tpu_custom_call.1} parent=5 // pred_check_branch
        %205 = sbr.rel (%p203) target = $region44
      $region43: #{tpu_custom_call.1} parent=5 // pred_region
        %s206 = ssub.s32 %s15, 2
        // Predicated region
        $region45: #{tpu_custom_call.1} parent=43 // pred_check
          %p207 = pneg %p91
        $region46: #{tpu_custom_call.1} parent=43 // pred_check_branch
          %209 = sbr.rel (%p207) target = $region48
        $region47: #{tpu_custom_call.1} parent=43 // pred_region
          %s210 = sand.u32 %s76, 1
          %s211 = scalar_lea.sflag [#allocation4], %s210
          %s212 = sand.u32 %s76, 1
          %s213 = smul.addr %s212, 8
          %s214 = scalar_lea.vmem [#allocation7], %s213
          %216 = dma.done %s211, 128
        $region48: #{tpu_custom_call.1} parent=43 // pred_fallthru
          _
      $region44: #{tpu_custom_call.1} parent=5 // pred_fallthru
        _
    $region6: #{tpu_custom_call.1} parent=1 // loop_footer
      %s19 = sadd.s32 1, %s15
    $region7: #{tpu_custom_call.1} parent=1 // loop_footer_branch
      %14 = sbr.rel target = $region3
    $region8: #{tpu_custom_call.1} parent=1 // loop_exit
      _
    %217 = vsyncpa [#allocation3], 1
    %s218 = scalar_lea.sflag [#allocation3], 1
    %219 = vsyncpa %s218, 1
    %220 = vsyncpa [#allocation4], 1
    %s221 = scalar_lea.sflag [#allocation4], 1
    %222 = vsyncpa %s221, 1
    %223 = vsyncpa [#allocation5], 1
    %s224 = scalar_lea.sflag [#allocation5], 1
    %225 = vsyncpa %s224, 1

</llo_original>
